<compile_context>
chip_gen: v5e
topology: v5e:2x2
jax: 0.10.0
libtpu: 0.0.40
codegen_flags: <defaults>
</compile_context>

<pallas_src>
import math

import jax
import jax.numpy as jnp
from jax.experimental import pallas as pl
from jax.experimental.pallas import tpu as pltpu


_SQRT_2_OVER_PI = math.sqrt(2.0 / math.pi)


def _gelu(x):
    # GPT-2 style tanh gelu, exactly as `gelu` in PCLL.py.
    # x*x*x keeps the cube on the VPU (jnp.power(x, 3.) can hit the EUP).
    return 0.5 * x * (1.0 + jnp.tanh(_SQRT_2_OVER_PI * (x + 0.044715 * (x * x * x))))


def _softmax_lastdim(scores):
    # Numerically stable softmax over the lane-dense last axis.  Normalization
    # uses the EUP approximate reciprocal + one Newton refinement (two cheap
    # VPU ops) instead of a divide serialized behind exp/tanh on the EUP slot.
    scores = scores - jnp.max(scores, axis=-1, keepdims=True)
    e = jnp.exp(scores)
    denom = jnp.sum(e, axis=-1, keepdims=True)
    inv = pl.reciprocal(denom, approx=True)
    inv = inv * (2.0 - denom * inv)          # Newton step -> ~f32 accurate
    return e * inv


def _make_kernel(mask_mode, precision):
    """mask_mode: None (no mask), "row" ((1,S) block), "full" ((TB,S) block)."""

    def kernel(*refs):
        if mask_mode is None:
            x_ref, w_ref, rep_ref, scores_ref = refs
            mask_ref = None
        else:
            x_ref, w_ref, mask_ref, rep_ref, scores_ref = refs

        x = x_ref[...]                                   # (TB, S, H) input dtype
        tb, s, h = x.shape

        # (1) logits[b, s] = sum_h x[b, s, h] * w[h]
        #     One flattened natural-orientation MXU matmul (M = TB*S, K = H,
        #     N = 1) with f32 accumulation, instead of TB tiny batched dots.
        logits = jnp.dot(x.reshape(tb * s, h), w_ref[...],
                         preferred_element_type=jnp.float32,
                         precision=precision)            # (TB*S, 1) f32
        logits = logits.reshape(tb, s)                   # tiny relayout

        scores = _gelu(logits)
        if mask_ref is not None:
            # "row" block is (1, S) and broadcasts over TB; "full" is (TB, S).
            scores = scores + mask_ref[...].astype(jnp.float32)
        p = _softmax_lastdim(scores)                     # (TB, S) float32

        # (2) rep[b, h] = sum_s p[b, s] * x[b, s, h]
        #     VPU multiply + sublane-axis reduce, all-f32 accumulation.  Keeps
        #     the weighted sum off the MXU (no per-batch M=1 fill/drain) and
        #     off the critical path on fast-HBM chips.
        rep = jnp.sum(x.astype(jnp.float32) * p[:, :, None], axis=1)  # (TB, H)

        rep_ref[...] = rep.astype(rep_ref.dtype)
        scores_ref[...] = p.astype(scores_ref.dtype)

    return kernel


def _tpu_params():
    """Returns (physical VMEM bytes per TensorCore, chip has >1 TensorCore)."""
    vmem_cap = 64 * 1024 * 1024            # conservative fallback (v7x-safe)
    try:
        info = pltpu.get_tpu_info()
        vmem_cap = int(getattr(info, "vmem_capacity_bytes", vmem_cap))
    except Exception:
        pass
    multi_core = False
    try:
        kind = jax.devices()[0].device_kind.lower()
        # v4 / v5p / v7x expose 2 TensorCores per chip; only there does
        # splitting the ("parallel",) batch grid axis buy anything.
        multi_core = any(tag in kind for tag in ("v4", "v5p", "v7", "7x"))
    except Exception:
        pass
    return vmem_cap, multi_core


def _pick_block_batch(batch, seq, hidden, in_itemsize, budget_bytes, multi_core):
    """Pick the batch tile TB.

    TB is a multiple of 8 (dense sublane stores for the (TB,H)/(TB,S) output
    blocks) or the full batch (block dim == array dim is always legal).  The
    grid is pl.cdiv(batch, TB); tail blocks are clipped by Pallas.
    """
    # Conservative VMEM bytes charged per batch row per grid step:
    #   2 * S*H*in_itemsize   double-buffered input slab
    #   2 * S*H*4             worst-case f32 temporaries of the VPU weighted
    #                         sum (f32 cast of x + x*p product)
    #   (S+H) * ~12           logits / scores / output blocks (negligible)
    per_row = seq * hidden * (2 * in_itemsize + 8) + (seq + hidden) * 12
    max_tb = max(int(budget_bytes) // per_row, 1)

    if batch <= 8 or max_tb >= batch:
        tb = batch
    else:
        tb = max((max_tb // 8) * 8, 8)

    if multi_core and batch > 8:
        # Keep >= 2 grid steps (an even count when possible) so a 2-TensorCore
        # chip can shard the batch axis without an idle-core tail step.
        two_step = max(((-(-batch // 2) + 7) // 8) * 8, 8)
        tb = min(tb, two_step)
    return min(tb, batch)


def average_self_attention(inputs, attention_weights, attention_mask=None, *,
                           block_batch=None, vmem_limit_bytes=None,
                           precision=None):
    """Pallas implementation of AverageSelfAttention.forward.

    inputs:            (B, S, H) or (S, H) array; streamed in its own dtype
                       (no wrapper-side cast — store in bf16 to halve HBM
                       traffic; accumulation is always f32).
    attention_weights: (H,) array
    attention_mask:    optional additive mask broadcastable to (B, S)
    block_batch:       override TB (must be a multiple of 8 or equal to B)
    vmem_limit_bytes:  scoped-VMEM limit (default: 0.8 * chip VMEM capacity)
    precision:         matmul precision for the logits dot (None = default)

    returns (representations, scores):
      3-D input -> representations (B, H), scores (B, S)
      2-D input -> representations (1, H), scores (S,)     (PyTorch 2-D branch)
    """
    inputs = jnp.asarray(inputs)
    squeeze_2d = inputs.ndim == 2
    if squeeze_2d:
        inputs = inputs[None]                            # (1, S, H)
    B, S, H = inputs.shape
    out_dtype = inputs.dtype
    w_col = jnp.asarray(attention_weights).astype(inputs.dtype).reshape(H, 1)

    vmem_cap, multi_core = _tpu_params()
    if vmem_limit_bytes is None:
        vmem_limit_bytes = int(vmem_cap * 0.8)
    vmem_limit_bytes = int(vmem_limit_bytes)

    if block_batch is None:
        tb = _pick_block_batch(B, S, H, inputs.dtype.itemsize,
                               budget_bytes=int(vmem_limit_bytes * 0.85),
                               multi_core=multi_core)
    else:
        tb = int(block_batch)
        if tb < 1 or (tb != B and tb % 8 != 0):
            raise ValueError(
                f"block_batch={tb} must be a multiple of 8 or equal to batch={B}")
        tb = min(tb, B)
    grid = (pl.cdiv(B, tb),)

    # Mask handling: batch-independent masks stream as a single (1, S) row
    # (no (B, S) broadcast materialized in HBM); per-batch masks stream as-is.
    mask_mode = None
    mask_arg = None
    if attention_mask is not None:
        m = jnp.asarray(attention_mask)
        batch_independent = (m.ndim < 2) or all(d == 1 for d in m.shape[:-1])
        if batch_independent:
            mask_mode = "row"
            mask_arg = jnp.broadcast_to(m, (1, S))
        else:
            mask_mode = "full"
            mask_arg = jnp.broadcast_to(m, (B, S))

    in_specs = [
        pl.BlockSpec((tb, S, H), lambda b: (b, 0, 0)),   # inputs slab
        pl.BlockSpec((H, 1), lambda b: (0, 0)),          # attention weights
    ]
    args = [inputs, w_col]
    if mask_mode == "full":
        in_specs.append(pl.BlockSpec((tb, S), lambda b: (b, 0)))
        args.append(mask_arg)
    elif mask_mode == "row":
        in_specs.append(pl.BlockSpec((1, S), lambda b: (0, 0)))
        args.append(mask_arg)

    rep, scores = pl.pallas_call(
        _make_kernel(mask_mode, precision),
        out_shape=(
            jax.ShapeDtypeStruct((B, H), out_dtype),     # representations
            jax.ShapeDtypeStruct((B, S), out_dtype),     # scores
        ),
        grid_spec=pltpu.PrefetchScalarGridSpec(
            num_scalar_prefetch=0,
            grid=grid,
            in_specs=in_specs,
            out_specs=[
                pl.BlockSpec((tb, H), lambda b: (b, 0)),
                pl.BlockSpec((tb, S), lambda b: (b, 0)),
            ],
        ),
        compiler_params=pltpu.CompilerParams(
            dimension_semantics=("parallel",),
            vmem_limit_bytes=vmem_limit_bytes),
    )(*args)

    if squeeze_2d:
        return rep, scores[0]
    return rep, scores


def _reference(inputs, w, attention_mask=None):
    # Pure-JAX reference mirroring the PyTorch forward exactly, with all
    # contractions done as exact f32 elementwise multiply+sum.
    inputs = jnp.asarray(inputs, jnp.float32)
    if inputs.ndim == 2:
        inputs = inputs[None]
    w = jnp.asarray(w, jnp.float32)
    scores = _gelu(jnp.sum(inputs * w[None, None, :], axis=-1))
    if attention_mask is not None:
        scores = scores + jnp.asarray(attention_mask, jnp.float32)
    scores = jax.nn.softmax(scores, axis=-1)
    rep = jnp.sum(inputs * scores[..., None], axis=1)
    return rep, scores


if __name__ == "__main__":
    key = jax.random.PRNGKey(0)
    k1, k2, k3, k4, k5 = jax.random.split(key, 5)

    # NOTE on tolerances: the logits contraction runs on the MXU at default
    # precision (f32 operands via bf16 passes), so ~1e-3-level differences vs.
    # the exact-f32 reference are expected; 5e-3 still catches structural bugs.
    TOL = dict(atol=5e-3, rtol=5e-3)

    # --- config 1: small shapes, no mask -------------------------------------
    B, S, H = 2, 8, 32
    x_small = jax.random.normal(k1, (B, S, H), dtype=jnp.float32)
    w_small = 0.02 * jax.random.normal(k2, (H,), dtype=jnp.float32)  # init.normal_(std=0.02)

    rep, scores = average_self_attention(x_small, w_small)
    rep, scores = jax.block_until_ready((rep, scores))
    rep_ref, scores_ref = _reference(x_small, w_small)
    assert rep.shape == (B, H) and scores.shape == (B, S)
    assert jnp.allclose(rep, rep_ref, **TOL), "representations mismatch (cfg 1)"
    assert jnp.allclose(scores, scores_ref, **TOL), "scores mismatch (cfg 1)"

    # --- config 1b: batch-independent (row) mask, streamed as (1, S) ----------
    row_mask = jnp.where(jnp.arange(S) >= 6, -1e4, 0.0).astype(jnp.float32)
    rep1b, scores1b = average_self_attention(x_small, w_small, row_mask)
    rep1b, scores1b = jax.block_until_ready((rep1b, scores1b))
    rep1b_ref, scores1b_ref = _reference(x_small, w_small, row_mask)
    assert jnp.allclose(rep1b, rep1b_ref, **TOL), "representations mismatch (cfg 1b)"
    assert jnp.allclose(scores1b, scores1b_ref, **TOL), "scores mismatch (cfg 1b)"

    # --- config 2: 2-D input path (PyTorch `len(weighted.shape) == 2` branch) -
    rep2, scores2 = average_self_attention(x_small[0], w_small)
    rep2, scores2 = jax.block_until_ready((rep2, scores2))
    rep2_ref, scores2_ref = _reference(x_small[0], w_small)
    assert rep2.shape == (1, H) and scores2.shape == (S,)
    assert jnp.allclose(rep2, rep2_ref, **TOL), "representations mismatch (cfg 2)"
    assert jnp.allclose(scores2, scores2_ref[0], **TOL), "scores mismatch (cfg 2)"

    # --- config 3: B=12 with per-batch mask and an explicit TB=8 --------------
    #     (exercises grid = cdiv(12, 8) = 2 with a clipped tail block)
    B2, S2, H2 = 12, 128, 256
    x_big = jax.random.normal(k3, (B2, S2, H2), dtype=jnp.float32)
    w_big = 0.02 * jax.random.normal(k4, (H2,), dtype=jnp.float32)
    pad = (jax.random.uniform(k5, (B2, S2)) < 0.2).astype(jnp.float32)
    mask = pad * (-1e4)

    rep3, scores3 = average_self_attention(x_big, w_big, mask, block_batch=8)
    rep3, scores3 = jax.block_until_ready((rep3, scores3))
    rep3_ref, scores3_ref = _reference(x_big, w_big, mask)
    assert jnp.allclose(rep3, rep3_ref, **TOL), "representations mismatch (cfg 3)"
    assert jnp.allclose(scores3, scores3_ref, **TOL), "scores mismatch (cfg 3)"

    # --- config 3b: same shapes, auto TB selection (VMEM-aware) ---------------
    rep3b, scores3b = average_self_attention(x_big, w_big, mask)
    rep3b, scores3b = jax.block_until_ready((rep3b, scores3b))
    assert jnp.allclose(rep3b, rep3_ref, **TOL), "representations mismatch (cfg 3b)"
    assert jnp.allclose(scores3b, scores3_ref, **TOL), "scores mismatch (cfg 3b)"

    # --- config 4: caller stores activations in bf16 (halves HBM traffic);
    #     kernel streams bf16, accumulates in f32 (affects `representations`
    #     only through input/output rounding) ----------------------------------
    rep4, scores4 = average_self_attention(x_big.astype(jnp.bfloat16),
                                           w_big.astype(jnp.bfloat16), mask)
    rep4, scores4 = jax.block_until_ready((rep4, scores4))
    assert jnp.allclose(rep4.astype(jnp.float32), rep3_ref,
                        atol=3e-2, rtol=3e-2), "bf16 rep mismatch"
    assert jnp.allclose(scores4.astype(jnp.float32), scores3_ref,
                        atol=3e-2, rtol=3e-2), "bf16 scores mismatch"

    print("KERNEL_OK")
</pallas_src>

<mosaic_0001>
module attributes {stable_mosaic.version = 11 : i64} {
  func.func @kernel(%arg0: i32, %arg1: memref<2x8x32xf32, #tpu.memory_space<vmem>>, %arg2: memref<32x1xf32, #tpu.memory_space<vmem>>, %arg3: memref<2x32xf32, #tpu.memory_space<vmem>>, %arg4: memref<2x8xf32, #tpu.memory_space<vmem>>) attributes {dimension_semantics = [#tpu.dimension_semantics<parallel>], iteration_bounds = array<i64: 1>, scalar_prefetch = 0 : i64, scratch_operands = 0 : i64, tpu.core_type = #tpu.core_type<tc>, window_params = [{transform_indices = @transform_0, window_bounds = array<i64: 2, 8, 32>}, {pipeline_mode = #tpu.pipeline_mode<synchronous>, transform_indices = @transform_1, window_bounds = array<i64: 32, 1>}, {transform_indices = @transform_2, window_bounds = array<i64: 2, 32>}, {transform_indices = @transform_3, window_bounds = array<i64: 2, 8>}]} {
    %c0 = arith.constant 0 : index
    %c0_0 = arith.constant 0 : index
    %c0_1 = arith.constant 0 : index
    %0 = vector.load %arg1[%c0, %c0_0, %c0_1] : memref<2x8x32xf32, #tpu.memory_space<vmem>>, vector<2x8x32xf32>
    %1 = vector.shape_cast %0 : vector<2x8x32xf32> to vector<16x32xf32>
    %c0_2 = arith.constant 0 : index
    %c0_3 = arith.constant 0 : index
    %2 = vector.load %arg2[%c0_2, %c0_3] : memref<32x1xf32, #tpu.memory_space<vmem>>, vector<32x1xf32>
    %cst = arith.constant dense<0.000000e+00> : vector<16x1xf32>
    %3 = tpu.matmul %1, %2, %cst {dimension_numbers = #tpu.dot_dimension_numbers<[1], [0], [0], [1], [0, 0, 1, 1], [], []>} : vector<16x32xf32>, vector<32x1xf32>, vector<16x1xf32> -> vector<16x1xf32>
    %4 = vector.shape_cast %3 : vector<16x1xf32> to vector<2x8xf32>
    %cst_4 = arith.constant 5.000000e-01 : f32
    %5 = vector.broadcast %cst_4 : f32 to vector<2x8xf32>
    %6 = arith.mulf %5, %4 : vector<2x8xf32>
    %7 = arith.mulf %4, %4 : vector<2x8xf32>
    %8 = arith.mulf %7, %4 : vector<2x8xf32>
    %cst_5 = arith.constant 4.471500e-02 : f32
    %9 = vector.broadcast %cst_5 : f32 to vector<2x8xf32>
    %10 = arith.mulf %9, %8 : vector<2x8xf32>
    %11 = arith.addf %4, %10 : vector<2x8xf32>
    %cst_6 = arith.constant 0.797884583 : f32
    %12 = vector.broadcast %cst_6 : f32 to vector<2x8xf32>
    %13 = arith.mulf %12, %11 : vector<2x8xf32>
    %14 = math.tanh %13 : vector<2x8xf32>
    %cst_7 = arith.constant 1.000000e+00 : f32
    %15 = vector.broadcast %cst_7 : f32 to vector<2x8xf32>
    %16 = arith.addf %15, %14 : vector<2x8xf32>
    %17 = arith.mulf %6, %16 : vector<2x8xf32>
    %cst_8 = arith.constant dense<0xFF800000> : vector<2xf32>
    %18 = vector.multi_reduction <maximumf>, %17, %cst_8 [1] : vector<2x8xf32> to vector<2xf32>
    %19 = vector.shape_cast %18 : vector<2xf32> to vector<2x1xf32>
    %20 = vector.broadcast %19 : vector<2x1xf32> to vector<2x8xf32>
    %21 = arith.subf %17, %20 : vector<2x8xf32>
    %22 = math.exp %21 : vector<2x8xf32>
    %cst_9 = arith.constant dense<0.000000e+00> : vector<2xf32>
    %23 = vector.multi_reduction <add>, %22, %cst_9 [1] : vector<2x8xf32> to vector<2xf32>
    %24 = vector.shape_cast %23 : vector<2xf32> to vector<2x1xf32>
    %25 = tpu.reciprocal %24 {approx = true} : vector<2x1xf32> -> vector<2x1xf32>
    %26 = arith.mulf %24, %25 : vector<2x1xf32>
    %cst_10 = arith.constant 2.000000e+00 : f32
    %27 = vector.broadcast %cst_10 : f32 to vector<2x1xf32>
    %28 = arith.subf %27, %26 : vector<2x1xf32>
    %29 = arith.mulf %25, %28 : vector<2x1xf32>
    %30 = vector.broadcast %29 : vector<2x1xf32> to vector<2x8xf32>
    %31 = arith.mulf %22, %30 : vector<2x8xf32>
    %32 = vector.shape_cast %31 : vector<2x8xf32> to vector<2x8x1xf32>
    %33 = vector.broadcast %32 : vector<2x8x1xf32> to vector<2x8x32xf32>
    %34 = arith.mulf %0, %33 : vector<2x8x32xf32>
    %cst_11 = arith.constant dense<0.000000e+00> : vector<2x32xf32>
    %35 = vector.multi_reduction <add>, %34, %cst_11 [1] : vector<2x8x32xf32> to vector<2x32xf32>
    %c0_12 = arith.constant 0 : index
    %c0_13 = arith.constant 0 : index
    %36 = vector.load %arg3[%c0_12, %c0_13] : memref<2x32xf32, #tpu.memory_space<vmem>>, vector<2x32xf32>
    tpu.vector_store %arg3[%c0_12, %c0_13], %35 {strides = array<i32>} : memref<2x32xf32, #tpu.memory_space<vmem>>, vector<2x32xf32>,
    %c0_14 = arith.constant 0 : index
    %c0_15 = arith.constant 0 : index
    %37 = vector.load %arg4[%c0_14, %c0_15] : memref<2x8xf32, #tpu.memory_space<vmem>>, vector<2x8xf32>
    tpu.vector_store %arg4[%c0_14, %c0_15], %31 {strides = array<i32>} : memref<2x8xf32, #tpu.memory_space<vmem>>, vector<2x8xf32>,
    return
  }
  func.func @transform_0(%arg0: i32) -> (i32, i32, i32) {
    %c0_i32 = arith.constant 0 : i32
    %c0_i32_0 = arith.constant 0 : i32
    %c0_i32_1 = arith.constant 0 : i32
    return %arg0, %c0_i32, %c0_i32_0 : i32, i32, i32
  }
  func.func @transform_1(%arg0: i32) -> (i32, i32) {
    %c0_i32 = arith.constant 0 : i32
    %c0_i32_0 = arith.constant 0 : i32
    %c0_i32_1 = arith.constant 0 : i32
    return %c0_i32, %c0_i32_0 : i32, i32
  }
  func.func @transform_2(%arg0: i32) -> (i32, i32) {
    %c0_i32 = arith.constant 0 : i32
    %c0_i32_0 = arith.constant 0 : i32
    return %arg0, %c0_i32 : i32, i32
  }
  func.func @transform_3(%arg0: i32) -> (i32, i32) {
    %c0_i32 = arith.constant 0 : i32
    %c0_i32_0 = arith.constant 0 : i32
    return %arg0, %c0_i32 : i32, i32
  }
}

</mosaic_0001>

<llo_original>
// kernel: tpu_custom_call.1
$region0: #{tpu_custom_call.1}
  #allocation0 [shape = 'u32[]', space=smem, size = 0x4, offset = 0x4, fixed_abs, tag = 'smem constant byte address 0x4 - core index']
  #allocation1 [shape = 'u32[72,128]{1,0:T(1,128)}', space=vmem, size = 0x9000, scoped, tag = 'internal scratch']
  %s0 = inlined_call_operand.vmem [shape: f32[2,8,32], index: 0, kind: input, shape index: {}]
  %s1 = inlined_call_operand.vmem [shape: f32[32,1], index: 1, kind: input, shape index: {}]
  %s2 = inlined_call_operand.hbm [shape: f32[2,32], index: 2, kind: output, shape index: {0}]
  %s3 = inlined_call_operand.hbm [shape: f32[2,8], index: 3, kind: output, shape index: {1}]
  %4 = xla_tuple %s2, %s3
  %s5 = sld [smem:[#allocation0]]
  $region26: #{tpu_custom_call.1} parent=0
    _
  %s7 = ssub.s32 1, %s5
  %s8 = scalar_select 0, %s7, %s5
  $region1: #{tpu_custom_call.1} parent=0
    #allocation2 [shape = 'u8[1024]{0}', space=vmem, size = 0x400, scoped, tag = 'output window, operand 0, single buffered']
    #allocation3 [shape = 's32[1]{0}', space=sflag, size = 0x4, scoped, tag = 'scoped memory for tpu_custom_call.1']
    #allocation4 [shape = 'u8[1024]{0}', space=vmem, size = 0x400, scoped, tag = 'output window, operand 1, single buffered']
    #allocation5 [shape = 's32[1]{0}', space=sflag, size = 0x4, scoped, tag = 'scoped memory for tpu_custom_call.1']
    %9 = vsyncpa [#allocation3], 0
    %10 = vsyncpa [#allocation5], 0
    // Predicated region
    $region2: #{tpu_custom_call.1} parent=1 // pred_check
      _
    $region3: #{tpu_custom_call.1} parent=1 // pred_check_branch
      %12 = sbr.rel (0) target = $region5
    $region4: #{tpu_custom_call.1} parent=1 // pred_region
      _
    $region5: #{tpu_custom_call.1} parent=1 // pred_fallthru
      _
    // Predicated region
    $region6: #{tpu_custom_call.1} parent=1 // pred_check
      _
    $region7: #{tpu_custom_call.1} parent=1 // pred_check_branch
      %14 = sbr.rel (0) target = $region9
    $region8: #{tpu_custom_call.1} parent=1 // pred_region
      _
    $region9: #{tpu_custom_call.1} parent=1 // pred_fallthru
      _
    %v15 = vld [vmem:[%s0] sm:$0xff]
    %v16 = vld [vmem:[%s0 + $0x8] sm:$0xff]
    %v17 = vld [vmem:[%s1] sm:$0xff]
    %v18 = vld [vmem:[%s1 + $0x8] sm:$0xff]
    %v19 = vld [vmem:[%s1 + $0x10] sm:$0xff]
    %v20 = vld [vmem:[%s1 + $0x18] sm:$0xff]
    %vm21 = vcmask 261120
    %v23 = vsel %vm21, %v15, 0
    %v26 = vsel %vm21, %v16, 0
    %28 = vmatpush.msra.mxu0 0.0
    %29 = vmatpush.msra.mxu0 0.0
    %30 = vmatpush.msra.mxu0 0.0
    %31 = vmatpush.msra.mxu0 0.0
    %32 = vmatpush.msra.mxu0 0.0
    %33 = vmatpush.msra.mxu0 0.0
    %34 = vmatpush.msra.mxu0 0.0
    %35 = vmatpush.msra.mxu0 0.0
    %36 = vmatpush.msra.mxu0 0.0
    %37 = vmatpush.msra.mxu0 0.0
    %38 = vmatpush.msra.mxu0 0.0
    %39 = vmatpush.msra.mxu0 0.0
    %40 = vmatpush.msra.mxu0 %v20
    %41 = vmatpush.msra.mxu0 %v19
    %42 = vmatpush.msra.mxu0 %v18
    %43 = vmatpush.msra.mxu0 %v17
    %44 = vmatmul.f32.gmra.mxu0 %v23
    %v45 = vpop.f32.mrf.mxu0
    %v46 = vadd.f32 0.0, %v45
    %47 = vmatmul.f32.gmra.mxu0 %v26
    %v48 = vpop.f32.mrf.mxu0
    %v49 = vadd.f32 0.0, %v48
    %50 = vdwg.mxu0
    %v51 = vmul.f32 %v46, 0.5
    %v52 = vmul.f32 %v49, 0.5
    %v53 = vmul.f32 %v46, %v46
    %v54 = vmul.f32 %v49, %v49
    %v55 = vmul.f32 %v53, %v46
    %v56 = vmul.f32 %v54, %v49
    %v57 = vmul.f32 %v55, 0.044715
    %v58 = vmul.f32 %v56, 0.044715
    %v59 = vadd.f32 %v46, %v57
    %v60 = vadd.f32 %v49, %v58
    %v61 = vmul.f32 %v59, 0.7978846
    %v62 = vmul.f32 %v60, 0.7978846
    %v63 = vtanh.pop %v61
    %v64 = vtanh.pop %v62
    %v65 = vadd.f32 %v63, 1.0
    %v66 = vadd.f32 %v64, 1.0
    %v67 = vmul.f32 %v51, %v65
    %v68 = vmul.f32 %v52, %v66
    %71 = vset.pattern.permute.xlu0 0
    %72 = vperm.xlu0 %71, %v67
    %v73 = vpop.permute.xlu0 %72
    %74 = vset.pattern.permute.xlu0 0
    %75 = vperm.xlu0 %74, %v68
    %v76 = vpop.permute.xlu0 %75
    %v77 = vlaneseq
    %v78 = vand.u32 %v77, 127
    %v79 = vperm.slane %v73, %v78
    %v80 = vperm.slane %v76, %v78
    %vm81 = vcmask 1041409
    %v82 = vsel %vm81, %v80, %v79
    %vm84 = vcmask 58368
    %v85 = vsel %vm84, %v82, -inf
    %86 = vmax.xlane.f32.xlu0 %v85
    %v87 = vpop.xlane.xlu0 %86
    %v89 = vperm.slane %v87, 0
    %v90 = vperm.slane %v87, 1
    %v93 = vsub.f32 %v67, %v89
    %v94 = vsub.f32 %v68, %v90
    %v95 = vmul.f32 %v93, 1.442695
    %v96 = vpow.pop %v95
    %v97 = vmul.f32 %v94, 1.442695
    %v98 = vpow.pop %v97
    %101 = vset.pattern.permute.xlu0 0
    %102 = vperm.xlu0 %101, %v96
    %v103 = vpop.permute.xlu0 %102
    %104 = vset.pattern.permute.xlu0 0
    %105 = vperm.xlu0 %104, %v98
    %v106 = vpop.permute.xlu0 %105
    %v107 = vperm.slane %v103, %v78
    %v108 = vperm.slane %v106, %v78
    %v109 = vsel %vm81, %v108, %v107
    %v111 = vsel %vm84, %v109, 0.0
    %112 = vadd.xlane.f32.xlu0 %v111
    %v113 = vpop.xlane.xlu0 %112
    %v114 = vrcp.pop %v113
    %v115 = vmul.f32 %v113, %v114
    %v116 = vsub.f32 2.0, %v115
    %v117 = vmul.f32 %v114, %v116
    %v119 = vperm.slane %v117, 0
    %v120 = vperm.slane %v117, 1
    %v123 = vmul.f32 %v96, %v119
    %v124 = vmul.f32 %v98, %v120
    %126 = vset.pattern.permute.xlu0 0
    %127 = vperm.xlu0 %126, %v123
    %v128 = vpop.permute.xlu0 %127
    %131 = vset.pattern.permute.xlu0 0
    %132 = vperm.xlu0 %131, %v124
    %v133 = vpop.permute.xlu0 %132
    %v135 = vmul.f32 %v15, %v128
    %v136 = vmul.f32 %v16, %v133
    %v137 = vsel %vm21, %v135, 0.0
    %v138 = vrot.slane %v137, 4
    %v139 = vadd.f32 %v137, %v138
    %v140 = vrot.slane %v139, 2
    %v141 = vadd.f32 %v139, %v140
    %v142 = vrot.slane %v141, 1
    %v143 = vadd.f32 %v141, %v142
    %v144 = vsel %vm21, %v136, 0.0
    %v145 = vrot.slane %v144, 4
    %v146 = vadd.f32 %v144, %v145
    %v147 = vrot.slane %v146, 2
    %v148 = vadd.f32 %v146, %v147
    %v149 = vrot.slane %v148, 1
    %v150 = vadd.f32 %v148, %v149
    %v153 = vsel %vm81, %v150, %v143
    %vm155 = vcmask 254976
    %156 = vst.msk [vmem:[#allocation2] sm:$0x3] %vm155, %v153
    %v157 = vperm.slane %v128, %v78
    %v158 = vperm.slane %v133, %v78
    %v159 = vsel %vm81, %v158, %v157
    %161 = vst.msk [vmem:[#allocation4] sm:$0x3] %vm84, %v159
    // Predicated region
    $region10: #{tpu_custom_call.1} parent=1 // pred_check
      _
    $region11: #{tpu_custom_call.1} parent=1 // pred_check_branch
      %163 = sbr.rel (0) target = $region13
    $region12: #{tpu_custom_call.1} parent=1 // pred_region
      %165 = vsyncadd [#allocation3], 0
      %s167 = sshll.u32 [#allocation2], 4
      %s168 = int_to_ptr.vmem [resolvable:$true] %s167
      %s169 = sshll.u32 %s2, 4
      %s170 = int_to_ptr.hbm [resolvable:$true] %s169
      %172 = dma.vmem_to_hbm [thread:$0]  %s168, 32, %s170, [#allocation3]
    $region13: #{tpu_custom_call.1} parent=1 // pred_fallthru
      _
    // Predicated region
    $region14: #{tpu_custom_call.1} parent=1 // pred_check
      _
    $region15: #{tpu_custom_call.1} parent=1 // pred_check_branch
      %174 = sbr.rel (0) target = $region17
    $region16: #{tpu_custom_call.1} parent=1 // pred_region
      %176 = vsyncadd [#allocation5], 0
      %s178 = sshll.u32 [#allocation4], 4
      %s179 = int_to_ptr.vmem [resolvable:$true] %s178
      %s180 = sshll.u32 %s3, 4
      %s181 = int_to_ptr.hbm [resolvable:$true] %s180
      %183 = dma.vmem_to_hbm [thread:$0]  %s179, 32, %s181, [#allocation5]
    $region17: #{tpu_custom_call.1} parent=1 // pred_fallthru
      _
    // Predicated region
    $region18: #{tpu_custom_call.1} parent=1 // pred_check
      _
    $region19: #{tpu_custom_call.1} parent=1 // pred_check_branch
      %185 = sbr.rel (0) target = $region21
    $region20: #{tpu_custom_call.1} parent=1 // pred_region
      %187 = dma.done [#allocation3], 32
    $region21: #{tpu_custom_call.1} parent=1 // pred_fallthru
      _
    // Predicated region
    $region22: #{tpu_custom_call.1} parent=1 // pred_check
      _
    $region23: #{tpu_custom_call.1} parent=1 // pred_check_branch
      %189 = sbr.rel (0) target = $region25
    $region24: #{tpu_custom_call.1} parent=1 // pred_region
      %191 = dma.done [#allocation5], 32
    $region25: #{tpu_custom_call.1} parent=1 // pred_fallthru
      _
    %192 = vsyncpa [#allocation3], 1
    %193 = vsyncpa [#allocation5], 1

</llo_original>
